<compile_context>
chip_gen: v7x
topology: tpu7x:2x2x1
jax: 0.10.0
libtpu: 0.0.40
codegen_flags: <defaults>
</compile_context>

<pallas_src>
import jax
import jax.numpy as jnp
from jax.experimental import pallas as pl
from jax.experimental.pallas import tpu as pltpu

N_OBS = 6        # Acrobot-v1 observation size
N_ACT = 3        # Acrobot-v1 action count
HIDDEN = 128
PAD_ACT = 8      # layer-3 output rows padded to a sublane multiple (>= N_ACT)


def _round_up(n, m):
    return ((n + m - 1) // m) * m


def dqn_kernel(xt_ref, w1_ref, w2_ref, w3_ref, out_ref):
    # Feature-major pipeline: xt is (N_OBS, TB); weights are PyTorch-layout
    # (out_features, in_features) with the bias packed as the last column.
    xt = xt_ref[...].astype(jnp.bfloat16)                          # (N_OBS, TB)

    w1 = w1_ref[:, :N_OBS].astype(jnp.bfloat16)                    # (128, 6)
    b1 = w1_ref[:, N_OBS:]                                         # (128, 1) f32
    h1 = jnp.dot(w1, xt, preferred_element_type=jnp.float32) + b1  # (128, TB)
    h1 = jnp.maximum(h1, 0.0)

    w2 = w2_ref[:, :HIDDEN].astype(jnp.bfloat16)                   # (128, 128)
    b2 = w2_ref[:, HIDDEN:]                                        # (128, 1)
    h2 = jnp.dot(w2, h1.astype(jnp.bfloat16),
                 preferred_element_type=jnp.float32) + b2          # (128, TB)
    h2 = jnp.maximum(h2, 0.0)

    w3 = w3_ref[:, :HIDDEN].astype(jnp.bfloat16)                   # (8, 128)
    b3 = w3_ref[:, HIDDEN:]                                        # (8, 1)
    out = jnp.dot(w3, h2.astype(jnp.bfloat16),
                  preferred_element_type=jnp.float32) + b3         # (8, TB)
    out_ref[...] = out.astype(out_ref.dtype)


def dqn_forward(x, params, *, max_batch_tile=1024, min_tiles=1):
    """x: (B, N_OBS) float32. Returns (B, N_ACT) float32 Q-values.

    min_tiles=2 is useful on v7x (two TensorCores) for mid/large batches so the
    "parallel" grid axis actually has work to split; leave at 1 on v5e/v6e.
    """
    w1p, w2p, w3p = params
    B = x.shape[0]

    n_tiles = max(min_tiles, pl.cdiv(B, max_batch_tile))
    if n_tiles == 1:
        TB = _round_up(max(B, 1), 8)          # padding <= 7 rows
    else:
        TB = _round_up(pl.cdiv(B, n_tiles), 128)  # keep tiled blocks lane-dense
    B_pad = TB * n_tiles

    # Transpose input to feature-major (N_OBS, B_pad); padded columns are zero.
    xt = jnp.pad(x, ((0, B_pad - B), (0, 0))).T

    def resident(shape):
        # Constant block index => weights stay VMEM-resident across batch tiles.
        return pl.BlockSpec(shape, lambda i: (0, 0))

    out = pl.pallas_call(
        dqn_kernel,
        out_shape=jax.ShapeDtypeStruct((PAD_ACT, B_pad), jnp.float32),
        grid=(n_tiles,),
        in_specs=[
            pl.BlockSpec((N_OBS, TB), lambda i: (0, i)),   # batch-tiled activations
            resident(w1p.shape),
            resident(w2p.shape),
            resident(w3p.shape),
        ],
        out_specs=pl.BlockSpec((PAD_ACT, TB), lambda i: (0, i)),
        compiler_params=pltpu.CompilerParams(
            dimension_semantics=("parallel",),   # v7x: shard batch tiles over 2 TCs
        ),
    )(xt, w1p, w2p, w3p)

    # Real Q-values are rows [:N_ACT] and columns [:B].
    return out[:N_ACT, :B].T


def init_params(key):
    """PyTorch nn.Linear-style init: U(-1/sqrt(fan_in), 1/sqrt(fan_in)).

    Kernel-ready layout: each layer packed as one float32 array of shape
    (out_features, in_features + 1) where the last column is the bias.
    Layer 3 is zero-padded from N_ACT to PAD_ACT output rows.
    """
    def linear(key, fan_in, fan_out):
        kw, kb = jax.random.split(key)
        bound = 1.0 / jnp.sqrt(jnp.float32(fan_in))
        w = jax.random.uniform(kw, (fan_out, fan_in), jnp.float32, -bound, bound)
        b = jax.random.uniform(kb, (fan_out, 1), jnp.float32, -bound, bound)
        return jnp.concatenate([w, b], axis=1)

    k1, k2, k3 = jax.random.split(key, 3)
    w1p = linear(k1, N_OBS, HIDDEN)                       # (128, 7)
    w2p = linear(k2, HIDDEN, HIDDEN)                      # (128, 129)
    w3p = linear(k3, HIDDEN, N_ACT)                       # (3, 129)
    w3p = jnp.pad(w3p, ((0, PAD_ACT - N_ACT), (0, 0)))    # (8, 129), pad rows = 0

    return w1p, w2p, w3p


def reference_forward(x, params):
    """Pure-JAX reference with the same numerics (bf16 matmul inputs, f32 accum)."""
    w1p, w2p, w3p = params

    def layer(h, wp, relu):
        w = wp[:, :-1]
        b = wp[:, -1]
        y = jnp.dot(h.astype(jnp.bfloat16), w.T.astype(jnp.bfloat16),
                    preferred_element_type=jnp.float32) + b
        return jnp.maximum(y, 0.0) if relu else y

    h1 = layer(x, w1p, True)
    h2 = layer(h1, w2p, True)
    out = layer(h2, w3p, False)
    return out[:, :N_ACT]


if __name__ == "__main__":
    key = jax.random.PRNGKey(0)
    kx, kp = jax.random.split(key)

    B = 8
    x = jax.random.normal(kx, (B, N_OBS), jnp.float32)
    params = init_params(kp)

    out = dqn_forward(x, params)
    out = jax.block_until_ready(out)

    ref = reference_forward(x, params)
    assert out.shape == (B, N_ACT)
    err = float(jnp.max(jnp.abs(out - ref)))
    assert err < 1e-2, f"max abs err: {err}"

    # TODO(synk): gym environment interaction / replay buffer / DQN training loop
    # are host-side and out of scope for the kernel; only the forward pass is here.
    print("KERNEL_OK")
</pallas_src>

<mosaic_0001>
module attributes {stable_mosaic.version = 11 : i64} {
  func.func @dqn_kernel(%arg0: i32, %arg1: memref<6x8xf32, #tpu.memory_space<vmem>>, %arg2: memref<128x7xf32, #tpu.memory_space<vmem>>, %arg3: memref<128x129xf32, #tpu.memory_space<vmem>>, %arg4: memref<8x129xf32, #tpu.memory_space<vmem>>, %arg5: memref<8x8xf32, #tpu.memory_space<vmem>>) attributes {dimension_semantics = [#tpu.dimension_semantics<parallel>], iteration_bounds = array<i64: 1>, scalar_prefetch = 0 : i64, scratch_operands = 0 : i64, tpu.core_type = #tpu.core_type<tc>, window_params = [{transform_indices = @transform_0, window_bounds = array<i64: 6, 8>}, {pipeline_mode = #tpu.pipeline_mode<synchronous>, transform_indices = @transform_1, window_bounds = array<i64: 128, 7>}, {pipeline_mode = #tpu.pipeline_mode<synchronous>, transform_indices = @transform_2, window_bounds = array<i64: 128, 129>}, {pipeline_mode = #tpu.pipeline_mode<synchronous>, transform_indices = @transform_3, window_bounds = array<i64: 8, 129>}, {transform_indices = @transform_4, window_bounds = array<i64: 8, 8>}]} {
    %c0 = arith.constant 0 : index
    %c0_0 = arith.constant 0 : index
    %0 = vector.load %arg1[%c0, %c0_0] : memref<6x8xf32, #tpu.memory_space<vmem>>, vector<6x8xf32>
    %1 = arith.truncf %0 : vector<6x8xf32> to vector<6x8xbf16>
    %c0_1 = arith.constant 0 : index
    %c0_2 = arith.constant 0 : index
    %2 = vector.load %arg2[%c0_1, %c0_2] : memref<128x7xf32, #tpu.memory_space<vmem>>, vector<128x6xf32>
    %3 = arith.truncf %2 : vector<128x6xf32> to vector<128x6xbf16>
    %c0_3 = arith.constant 0 : index
    %c6 = arith.constant 6 : index
    %4 = vector.load %arg2[%c0_3, %c6] : memref<128x7xf32, #tpu.memory_space<vmem>>, vector<128x1xf32>
    %cst = arith.constant dense<0.000000e+00> : vector<128x8xf32>
    %5 = tpu.matmul %3, %1, %cst {dimension_numbers = #tpu.dot_dimension_numbers<[1], [0], [0], [1], [0, 0, 1, 1], [], []>} : vector<128x6xbf16>, vector<6x8xbf16>, vector<128x8xf32> -> vector<128x8xf32>
    %6 = vector.broadcast %4 : vector<128x1xf32> to vector<128x8xf32>
    %7 = arith.addf %5, %6 : vector<128x8xf32>
    %cst_4 = arith.constant 0.000000e+00 : f32
    %8 = vector.broadcast %cst_4 : f32 to vector<128x8xf32>
    %9 = arith.maximumf %7, %8 : vector<128x8xf32>
    %c0_5 = arith.constant 0 : index
    %c0_6 = arith.constant 0 : index
    %10 = vector.load %arg3[%c0_5, %c0_6] : memref<128x129xf32, #tpu.memory_space<vmem>>, vector<128x128xf32>
    %11 = arith.truncf %10 : vector<128x128xf32> to vector<128x128xbf16>
    %c0_7 = arith.constant 0 : index
    %c128 = arith.constant 128 : index
    %12 = vector.load %arg3[%c0_7, %c128] : memref<128x129xf32, #tpu.memory_space<vmem>>, vector<128x1xf32>
    %13 = arith.truncf %9 : vector<128x8xf32> to vector<128x8xbf16>
    %cst_8 = arith.constant dense<0.000000e+00> : vector<128x8xf32>
    %14 = tpu.matmul %11, %13, %cst_8 {dimension_numbers = #tpu.dot_dimension_numbers<[1], [0], [0], [1], [0, 0, 1, 1], [], []>} : vector<128x128xbf16>, vector<128x8xbf16>, vector<128x8xf32> -> vector<128x8xf32>
    %15 = vector.broadcast %12 : vector<128x1xf32> to vector<128x8xf32>
    %16 = arith.addf %14, %15 : vector<128x8xf32>
    %cst_9 = arith.constant 0.000000e+00 : f32
    %17 = vector.broadcast %cst_9 : f32 to vector<128x8xf32>
    %18 = arith.maximumf %16, %17 : vector<128x8xf32>
    %c0_10 = arith.constant 0 : index
    %c0_11 = arith.constant 0 : index
    %19 = vector.load %arg4[%c0_10, %c0_11] : memref<8x129xf32, #tpu.memory_space<vmem>>, vector<8x128xf32>
    %20 = arith.truncf %19 : vector<8x128xf32> to vector<8x128xbf16>
    %c0_12 = arith.constant 0 : index
    %c128_13 = arith.constant 128 : index
    %21 = vector.load %arg4[%c0_12, %c128_13] : memref<8x129xf32, #tpu.memory_space<vmem>>, vector<8x1xf32>
    %22 = arith.truncf %18 : vector<128x8xf32> to vector<128x8xbf16>
    %cst_14 = arith.constant dense<0.000000e+00> : vector<8x8xf32>
    %23 = tpu.matmul %20, %22, %cst_14 {dimension_numbers = #tpu.dot_dimension_numbers<[1], [0], [0], [1], [0, 0, 1, 1], [], []>} : vector<8x128xbf16>, vector<128x8xbf16>, vector<8x8xf32> -> vector<8x8xf32>
    %24 = vector.broadcast %21 : vector<8x1xf32> to vector<8x8xf32>
    %25 = arith.addf %23, %24 : vector<8x8xf32>
    %c0_15 = arith.constant 0 : index
    %c0_16 = arith.constant 0 : index
    %26 = vector.load %arg5[%c0_15, %c0_16] : memref<8x8xf32, #tpu.memory_space<vmem>>, vector<8x8xf32>
    tpu.vector_store %arg5[%c0_15, %c0_16], %25 {strides = array<i32>} : memref<8x8xf32, #tpu.memory_space<vmem>>, vector<8x8xf32>,
    return
  }
  func.func @transform_0(%arg0: i32) -> (i32, i32) {
    %c0_i32 = arith.constant 0 : i32
    %c0_i32_0 = arith.constant 0 : i32
    return %c0_i32, %arg0 : i32, i32
  }
  func.func @transform_1(%arg0: i32) -> (i32, i32) {
    %c0_i32 = arith.constant 0 : i32
    %c0_i32_0 = arith.constant 0 : i32
    %c0_i32_1 = arith.constant 0 : i32
    return %c0_i32, %c0_i32_0 : i32, i32
  }
  func.func @transform_2(%arg0: i32) -> (i32, i32) {
    %c0_i32 = arith.constant 0 : i32
    %c0_i32_0 = arith.constant 0 : i32
    %c0_i32_1 = arith.constant 0 : i32
    return %c0_i32, %c0_i32_0 : i32, i32
  }
  func.func @transform_3(%arg0: i32) -> (i32, i32) {
    %c0_i32 = arith.constant 0 : i32
    %c0_i32_0 = arith.constant 0 : i32
    %c0_i32_1 = arith.constant 0 : i32
    return %c0_i32, %c0_i32_0 : i32, i32
  }
  func.func @transform_4(%arg0: i32) -> (i32, i32) {
    %c0_i32 = arith.constant 0 : i32
    %c0_i32_0 = arith.constant 0 : i32
    return %c0_i32, %arg0 : i32, i32
  }
}

</mosaic_0001>

<llo_original>
// kernel: tpu_custom_call.1
$region0: #{tpu_custom_call.1}
  #allocation0 [shape = 'u32[]', space=smem, size = 0x4, offset = 0x4, fixed_abs, tag = 'smem constant byte address 0x4 - core index']
  #allocation1 [shape = 'u32[144,128]{1,0:T(1,128)}', space=vmem, size = 0x12000, scoped, tag = 'internal scratch']
  %s0 = inlined_call_operand.vmem [shape: f32[6,8], index: 0, kind: input, shape index: {}]
  %s1 = inlined_call_operand.vmem [shape: f32[128,7], index: 1, kind: input, shape index: {}]
  %s2 = inlined_call_operand.vmem [shape: f32[128,129], index: 2, kind: input, shape index: {}]
  %s3 = inlined_call_operand.vmem [shape: f32[8,129], index: 3, kind: input, shape index: {}]
  %s4 = inlined_call_operand.hbm [shape: f32[8,8], index: 4, kind: output, shape index: {}]
  %s5 = sld [smem:[#allocation0]]
  $region26: #{tpu_custom_call.1} parent=0
    _
  %s7 = ssub.s32 1, %s5
  %s8 = scalar_select 0, %s7, %s5
  $region1: #{tpu_custom_call.1} parent=0
    #allocation2 [shape = 'u8[4096]{0}', space=vmem, size = 0x1000, scoped, tag = 'output window, operand 0, single buffered']
    #allocation3 [shape = 's32[1]{0}', space=sflag, size = 0x4, scoped, tag = 'scoped memory for tpu_custom_call.1']
    %9 = vsyncpa [#allocation3], 0
    // Predicated region
    $region2: #{tpu_custom_call.1} parent=1 // pred_check
      _
    $region3: #{tpu_custom_call.1} parent=1 // pred_check_branch
      %11 = sbr.rel (0) target = $region5
    $region4: #{tpu_custom_call.1} parent=1 // pred_region
      _
    $region5: #{tpu_custom_call.1} parent=1 // pred_fallthru
      _
    // Predicated region
    $region6: #{tpu_custom_call.1} parent=1 // pred_check
      _
    $region7: #{tpu_custom_call.1} parent=1 // pred_check_branch
      %13 = sbr.rel (0) target = $region9
    $region8: #{tpu_custom_call.1} parent=1 // pred_region
      _
    $region9: #{tpu_custom_call.1} parent=1 // pred_fallthru
      _
    // Predicated region
    $region10: #{tpu_custom_call.1} parent=1 // pred_check
      _
    $region11: #{tpu_custom_call.1} parent=1 // pred_check_branch
      %15 = sbr.rel (0) target = $region13
    $region12: #{tpu_custom_call.1} parent=1 // pred_region
      _
    $region13: #{tpu_custom_call.1} parent=1 // pred_fallthru
      _
    // Predicated region
    $region14: #{tpu_custom_call.1} parent=1 // pred_check
      _
    $region15: #{tpu_custom_call.1} parent=1 // pred_check_branch
      %17 = sbr.rel (0) target = $region17
    $region16: #{tpu_custom_call.1} parent=1 // pred_region
      _
    $region17: #{tpu_custom_call.1} parent=1 // pred_fallthru
      _
    %v19 = vld [vmem:[%s0] sm:$0x3f]
    %v20 = vpack.c.bf16 %v19, %v19
    %v21 = vld [vmem:[%s1] sm:$0xff]
    %v22 = vld [vmem:[%s1 + $0x8] sm:$0xff]
    %v23 = vld [vmem:[%s1 + $0x10] sm:$0xff]
    %v24 = vld [vmem:[%s1 + $0x18] sm:$0xff]
    %v25 = vld [vmem:[%s1 + $0x20] sm:$0xff]
    %v26 = vld [vmem:[%s1 + $0x28] sm:$0xff]
    %v27 = vld [vmem:[%s1 + $0x30] sm:$0xff]
    %v28 = vld [vmem:[%s1 + $0x38] sm:$0xff]
    %v29 = vld [vmem:[%s1 + $0x40] sm:$0xff]
    %v30 = vld [vmem:[%s1 + $0x48] sm:$0xff]
    %v31 = vld [vmem:[%s1 + $0x50] sm:$0xff]
    %v32 = vld [vmem:[%s1 + $0x58] sm:$0xff]
    %v33 = vld [vmem:[%s1 + $0x60] sm:$0xff]
    %v34 = vld [vmem:[%s1 + $0x68] sm:$0xff]
    %v35 = vld [vmem:[%s1 + $0x70] sm:$0xff]
    %v36 = vld [vmem:[%s1 + $0x78] sm:$0xff]
    %v37 = vpack.c.bf16 %v22, %v21
    %v38 = vpack.c.bf16 %v24, %v23
    %v39 = vpack.c.bf16 %v26, %v25
    %v40 = vpack.c.bf16 %v28, %v27
    %v41 = vpack.c.bf16 %v30, %v29
    %v42 = vpack.c.bf16 %v32, %v31
    %v43 = vpack.c.bf16 %v34, %v33
    %v44 = vpack.c.bf16 %v36, %v35
    %46 = vset.pattern.permute.xlu0 6
    %47 = vperm.xlu0 %46, %v21
    %v48 = vpop.permute.xlu0 %47
    %51 = vset.pattern.permute.xlu0 6
    %52 = vperm.xlu0 %51, %v22
    %v53 = vpop.permute.xlu0 %52
    %56 = vset.pattern.permute.xlu0 6
    %57 = vperm.xlu0 %56, %v23
    %v58 = vpop.permute.xlu0 %57
    %61 = vset.pattern.permute.xlu0 6
    %62 = vperm.xlu0 %61, %v24
    %v63 = vpop.permute.xlu0 %62
    %66 = vset.pattern.permute.xlu0 6
    %67 = vperm.xlu0 %66, %v25
    %v68 = vpop.permute.xlu0 %67
    %71 = vset.pattern.permute.xlu0 6
    %72 = vperm.xlu0 %71, %v26
    %v73 = vpop.permute.xlu0 %72
    %76 = vset.pattern.permute.xlu0 6
    %77 = vperm.xlu0 %76, %v27
    %v78 = vpop.permute.xlu0 %77
    %81 = vset.pattern.permute.xlu0 6
    %82 = vperm.xlu0 %81, %v28
    %v83 = vpop.permute.xlu0 %82
    %86 = vset.pattern.permute.xlu0 6
    %87 = vperm.xlu0 %86, %v29
    %v88 = vpop.permute.xlu0 %87
    %91 = vset.pattern.permute.xlu0 6
    %92 = vperm.xlu0 %91, %v30
    %v93 = vpop.permute.xlu0 %92
    %96 = vset.pattern.permute.xlu0 6
    %97 = vperm.xlu0 %96, %v31
    %v98 = vpop.permute.xlu0 %97
    %101 = vset.pattern.permute.xlu0 6
    %102 = vperm.xlu0 %101, %v32
    %v103 = vpop.permute.xlu0 %102
    %106 = vset.pattern.permute.xlu0 6
    %107 = vperm.xlu0 %106, %v33
    %v108 = vpop.permute.xlu0 %107
    %111 = vset.pattern.permute.xlu0 6
    %112 = vperm.xlu0 %111, %v34
    %v113 = vpop.permute.xlu0 %112
    %116 = vset.pattern.permute.xlu0 6
    %117 = vperm.xlu0 %116, %v35
    %v118 = vpop.permute.xlu0 %117
    %121 = vset.pattern.permute.xlu0 6
    %122 = vperm.xlu0 %121, %v36
    %v123 = vpop.permute.xlu0 %122
    %vm125 = vcmask 48128
    %v127 = vsel %vm125, %v37, 0
    %v130 = vsel %vm125, %v38, 0
    %v133 = vsel %vm125, %v39, 0
    %v136 = vsel %vm125, %v40, 0
    %v139 = vsel %vm125, %v41, 0
    %v142 = vsel %vm125, %v42, 0
    %v145 = vsel %vm125, %v43, 0
    %v148 = vsel %vm125, %v44, 0
    %vm150 = vcmask 1042432
    %v152 = vsel %vm150, %v20, 0
    %154 = vmatprep.subr.bf16.mxu0 0
    %155 = vmatpush1.bf16.msra.mxu0 %v152
    %156 = vmatprep.subr.bf16.mxu0 0
    %157 = vmatpush1.bf16.msra.mxu0 0
    %158 = vmatprep.subr.bf16.mxu0 0
    %159 = vmatpush1.bf16.msra.mxu0 0
    %160 = vmatprep.subr.bf16.mxu0 0
    %161 = vmatpush1.bf16.msra.mxu0 0
    %162 = vmatprep.subr.bf16.mxu0 0
    %163 = vmatpush1.bf16.msra.mxu0 0
    %164 = vmatprep.subr.bf16.mxu0 0
    %165 = vmatpush1.bf16.msra.mxu0 0
    %166 = vmatprep.subr.bf16.mxu0 0
    %167 = vmatpush1.bf16.msra.mxu0 0
    %168 = vmatprep.subr.bf16.mxu0 0
    %169 = vmatpush1.bf16.msra.mxu0 0
    %170 = vmatprep.subr.bf16.mxu0 0
    %171 = vmatpush1.bf16.msra.mxu0 0
    %172 = vmatprep.subr.bf16.mxu0 0
    %173 = vmatpush1.bf16.msra.mxu0 0
    %174 = vmatprep.subr.bf16.mxu0 0
    %175 = vmatpush1.bf16.msra.mxu0 0
    %176 = vmatprep.subr.bf16.mxu0 0
    %177 = vmatpush1.bf16.msra.mxu0 0
    %178 = vmatprep.subr.bf16.mxu0 0
    %179 = vmatpush1.bf16.msra.mxu0 0
    %180 = vmatprep.subr.bf16.mxu0 0
    %181 = vmatpush1.bf16.msra.mxu0 0
    %182 = vmatprep.subr.bf16.mxu0 0
    %183 = vmatpush1.bf16.msra.mxu0 0
    %184 = vmatprep.subr.bf16.mxu0 0
    %185 = vmatpush1.bf16.msra.mxu0 0
    %186 = vmatprep.mubr.bf16.mxu0 0
    %187 = vmatmul.mubr.bf16.gmra.mrb[0].mxu0 %v127
    %v188 = vpop.f32.mrb[0].mxu0
    %v189 = vadd.f32 %v48, %v188
    %v190 = vpop.f32.mrb[0].mxu0
    %v191 = vpop.f32.mrb[0].mxu0
    %v192 = vadd.f32 %v53, %v191
    %v193 = vpop.f32.mrb[0].mxu0
    %194 = vmatprep.mubr.bf16.mxu0 0
    %195 = vmatmul.mubr.bf16.gmra.mrb[0].mxu0 %v130
    %v196 = vpop.f32.mrb[0].mxu0
    %v197 = vadd.f32 %v58, %v196
    %v198 = vpop.f32.mrb[0].mxu0
    %v199 = vpop.f32.mrb[0].mxu0
    %v200 = vadd.f32 %v63, %v199
    %v201 = vpop.f32.mrb[0].mxu0
    %202 = vmatprep.mubr.bf16.mxu0 0
    %203 = vmatmul.mubr.bf16.gmra.mrb[0].mxu0 %v133
    %v204 = vpop.f32.mrb[0].mxu0
    %v205 = vadd.f32 %v68, %v204
    %v206 = vpop.f32.mrb[0].mxu0
    %v207 = vpop.f32.mrb[0].mxu0
    %v208 = vadd.f32 %v73, %v207
    %v209 = vpop.f32.mrb[0].mxu0
    %210 = vmatprep.mubr.bf16.mxu0 0
    %211 = vmatmul.mubr.bf16.gmra.mrb[0].mxu0 %v136
    %v212 = vpop.f32.mrb[0].mxu0
    %v213 = vadd.f32 %v78, %v212
    %v214 = vpop.f32.mrb[0].mxu0
    %v215 = vpop.f32.mrb[0].mxu0
    %v216 = vadd.f32 %v83, %v215
    %v217 = vpop.f32.mrb[0].mxu0
    %218 = vmatprep.mubr.bf16.mxu0 0
    %219 = vmatmul.mubr.bf16.gmra.mrb[0].mxu0 %v139
    %v220 = vpop.f32.mrb[0].mxu0
    %v221 = vadd.f32 %v88, %v220
    %v222 = vpop.f32.mrb[0].mxu0
    %v223 = vpop.f32.mrb[0].mxu0
    %v224 = vadd.f32 %v93, %v223
    %v225 = vpop.f32.mrb[0].mxu0
    %226 = vmatprep.mubr.bf16.mxu0 0
    %227 = vmatmul.mubr.bf16.gmra.mrb[0].mxu0 %v142
    %v228 = vpop.f32.mrb[0].mxu0
    %v229 = vadd.f32 %v98, %v228
    %v230 = vpop.f32.mrb[0].mxu0
    %v231 = vpop.f32.mrb[0].mxu0
    %v232 = vadd.f32 %v103, %v231
    %v233 = vpop.f32.mrb[0].mxu0
    %234 = vmatprep.mubr.bf16.mxu0 0
    %235 = vmatmul.mubr.bf16.gmra.mrb[0].mxu0 %v145
    %v236 = vpop.f32.mrb[0].mxu0
    %v237 = vadd.f32 %v108, %v236
    %v238 = vpop.f32.mrb[0].mxu0
    %v239 = vpop.f32.mrb[0].mxu0
    %v240 = vadd.f32 %v113, %v239
    %v241 = vpop.f32.mrb[0].mxu0
    %242 = vmatprep.mubr.bf16.mxu0 0
    %243 = vmatmul.mubr.bf16.gmra.mrb[0].mxu0 %v148
    %v244 = vpop.f32.mrb[0].mxu0
    %v245 = vadd.f32 %v118, %v244
    %v246 = vpop.f32.mrb[0].mxu0
    %v247 = vpop.f32.mrb[0].mxu0
    %v248 = vadd.f32 %v123, %v247
    %v249 = vpop.f32.mrb[0].mxu0
    %250 = vdwg.mxu0
    %v251 = vmax.f32 %v189, 0.0
    %v252 = vmax.f32 %v192, 0.0
    %v253 = vmax.f32 %v197, 0.0
    %v254 = vmax.f32 %v200, 0.0
    %v255 = vmax.f32 %v205, 0.0
    %v256 = vmax.f32 %v208, 0.0
    %v257 = vmax.f32 %v213, 0.0
    %v258 = vmax.f32 %v216, 0.0
    %v259 = vmax.f32 %v221, 0.0
    %v260 = vmax.f32 %v224, 0.0
    %v261 = vmax.f32 %v229, 0.0
    %v262 = vmax.f32 %v232, 0.0
    %v263 = vmax.f32 %v237, 0.0
    %v264 = vmax.f32 %v240, 0.0
    %v265 = vmax.f32 %v245, 0.0
    %v266 = vmax.f32 %v248, 0.0
    %v267 = vld [vmem:[%s2] sm:$0xff]
    %v268 = vld [vmem:[%s2 + $0x10] sm:$0xff]
    %v269 = vld [vmem:[%s2 + $0x20] sm:$0xff]
    %v270 = vld [vmem:[%s2 + $0x30] sm:$0xff]
    %v271 = vld [vmem:[%s2 + $0x40] sm:$0xff]
    %v272 = vld [vmem:[%s2 + $0x50] sm:$0xff]
    %v273 = vld [vmem:[%s2 + $0x60] sm:$0xff]
    %v274 = vld [vmem:[%s2 + $0x70] sm:$0xff]
    %v275 = vld [vmem:[%s2 + $0x80] sm:$0xff]
    %v276 = vld [vmem:[%s2 + $0x90] sm:$0xff]
    %v277 = vld [vmem:[%s2 + $0xa0] sm:$0xff]
    %v278 = vld [vmem:[%s2 + $0xb0] sm:$0xff]
    %v279 = vld [vmem:[%s2 + $0xc0] sm:$0xff]
    %v280 = vld [vmem:[%s2 + $0xd0] sm:$0xff]
    %v281 = vld [vmem:[%s2 + $0xe0] sm:$0xff]
    %v282 = vld [vmem:[%s2 + $0xf0] sm:$0xff]
    %v283 = vpack.c.bf16 %v268, %v267
    %v284 = vpack.c.bf16 %v270, %v269
    %v285 = vpack.c.bf16 %v272, %v271
    %v286 = vpack.c.bf16 %v274, %v273
    %v287 = vpack.c.bf16 %v276, %v275
    %v288 = vpack.c.bf16 %v278, %v277
    %v289 = vpack.c.bf16 %v280, %v279
    %v290 = vpack.c.bf16 %v282, %v281
    %v291 = vld [vmem:[%s2 + $0x8] sm:$0xff]
    %v292 = vld [vmem:[%s2 + $0x18] sm:$0xff]
    %v293 = vld [vmem:[%s2 + $0x28] sm:$0xff]
    %v294 = vld [vmem:[%s2 + $0x38] sm:$0xff]
    %v295 = vld [vmem:[%s2 + $0x48] sm:$0xff]
    %v296 = vld [vmem:[%s2 + $0x58] sm:$0xff]
    %v297 = vld [vmem:[%s2 + $0x68] sm:$0xff]
    %v298 = vld [vmem:[%s2 + $0x78] sm:$0xff]
    %v299 = vld [vmem:[%s2 + $0x88] sm:$0xff]
    %v300 = vld [vmem:[%s2 + $0x98] sm:$0xff]
    %v301 = vld [vmem:[%s2 + $0xa8] sm:$0xff]
    %v302 = vld [vmem:[%s2 + $0xb8] sm:$0xff]
    %v303 = vld [vmem:[%s2 + $0xc8] sm:$0xff]
    %v304 = vld [vmem:[%s2 + $0xd8] sm:$0xff]
    %v305 = vld [vmem:[%s2 + $0xe8] sm:$0xff]
    %v306 = vld [vmem:[%s2 + $0xf8] sm:$0xff]
    %v307 = vpack.c.bf16 %v252, %v251
    %v308 = vpack.c.bf16 %v254, %v253
    %v309 = vpack.c.bf16 %v256, %v255
    %v310 = vpack.c.bf16 %v258, %v257
    %v311 = vpack.c.bf16 %v260, %v259
    %v312 = vpack.c.bf16 %v262, %v261
    %v313 = vpack.c.bf16 %v264, %v263
    %v314 = vpack.c.bf16 %v266, %v265
    %316 = vset.pattern.permute.xlu0 0
    %317 = vperm.xlu0 %316, %v291
    %v318 = vpop.permute.xlu0 %317
    %321 = vset.pattern.permute.xlu0 0
    %322 = vperm.xlu0 %321, %v292
    %v323 = vpop.permute.xlu0 %322
    %326 = vset.pattern.permute.xlu0 0
    %327 = vperm.xlu0 %326, %v293
    %v328 = vpop.permute.xlu0 %327
    %331 = vset.pattern.permute.xlu0 0
    %332 = vperm.xlu0 %331, %v294
    %v333 = vpop.permute.xlu0 %332
    %336 = vset.pattern.permute.xlu0 0
    %337 = vperm.xlu0 %336, %v295
    %v338 = vpop.permute.xlu0 %337
    %341 = vset.pattern.permute.xlu0 0
    %342 = vperm.xlu0 %341, %v296
    %v343 = vpop.permute.xlu0 %342
    %346 = vset.pattern.permute.xlu0 0
    %347 = vperm.xlu0 %346, %v297
    %v348 = vpop.permute.xlu0 %347
    %351 = vset.pattern.permute.xlu0 0
    %352 = vperm.xlu0 %351, %v298
    %v353 = vpop.permute.xlu0 %352
    %356 = vset.pattern.permute.xlu0 0
    %357 = vperm.xlu0 %356, %v299
    %v358 = vpop.permute.xlu0 %357
    %361 = vset.pattern.permute.xlu0 0
    %362 = vperm.xlu0 %361, %v300
    %v363 = vpop.permute.xlu0 %362
    %366 = vset.pattern.permute.xlu0 0
    %367 = vperm.xlu0 %366, %v301
    %v368 = vpop.permute.xlu0 %367
    %371 = vset.pattern.permute.xlu0 0
    %372 = vperm.xlu0 %371, %v302
    %v373 = vpop.permute.xlu0 %372
    %376 = vset.pattern.permute.xlu0 0
    %377 = vperm.xlu0 %376, %v303
    %v378 = vpop.permute.xlu0 %377
    %381 = vset.pattern.permute.xlu0 0
    %382 = vperm.xlu0 %381, %v304
    %v383 = vpop.permute.xlu0 %382
    %386 = vset.pattern.permute.xlu0 0
    %387 = vperm.xlu0 %386, %v305
    %v388 = vpop.permute.xlu0 %387
    %391 = vset.pattern.permute.xlu0 0
    %392 = vperm.xlu0 %391, %v306
    %v393 = vpop.permute.xlu0 %392
    %395 = vmatprep.subr.bf16.mxu0 0
    %396 = vmatpush1.bf16.msra.mxu0 %v307
    %397 = vmatprep.subr.bf16.mxu0 0
    %398 = vmatpush1.bf16.msra.mxu0 %v308
    %399 = vmatprep.subr.bf16.mxu0 0
    %400 = vmatpush1.bf16.msra.mxu0 %v309
    %401 = vmatprep.subr.bf16.mxu0 0
    %402 = vmatpush1.bf16.msra.mxu0 %v310
    %403 = vmatprep.subr.bf16.mxu0 0
    %404 = vmatpush1.bf16.msra.mxu0 %v311
    %405 = vmatprep.subr.bf16.mxu0 0
    %406 = vmatpush1.bf16.msra.mxu0 %v312
    %407 = vmatprep.subr.bf16.mxu0 0
    %408 = vmatpush1.bf16.msra.mxu0 %v313
    %409 = vmatprep.subr.bf16.mxu0 0
    %410 = vmatpush1.bf16.msra.mxu0 %v314
    %411 = vmatprep.subr.bf16.mxu0 0
    %412 = vmatpush1.bf16.msra.mxu0 0
    %413 = vmatprep.subr.bf16.mxu0 0
    %414 = vmatpush1.bf16.msra.mxu0 0
    %415 = vmatprep.subr.bf16.mxu0 0
    %416 = vmatpush1.bf16.msra.mxu0 0
    %417 = vmatprep.subr.bf16.mxu0 0
    %418 = vmatpush1.bf16.msra.mxu0 0
    %419 = vmatprep.subr.bf16.mxu0 0
    %420 = vmatpush1.bf16.msra.mxu0 0
    %421 = vmatprep.subr.bf16.mxu0 0
    %422 = vmatpush1.bf16.msra.mxu0 0
    %423 = vmatprep.subr.bf16.mxu0 0
    %424 = vmatpush1.bf16.msra.mxu0 0
    %425 = vmatprep.subr.bf16.mxu0 0
    %426 = vmatpush1.bf16.msra.mxu0 0
    %427 = vmatprep.mubr.bf16.mxu0 0
    %428 = vmatmul.mubr.bf16.gmra.mrb[0].mxu0 %v283
    %v429 = vpop.f32.mrb[0].mxu0
    %v430 = vadd.f32 %v318, %v429
    %v431 = vpop.f32.mrb[0].mxu0
    %v432 = vpop.f32.mrb[0].mxu0
    %v433 = vadd.f32 %v323, %v432
    %v434 = vpop.f32.mrb[0].mxu0
    %435 = vmatprep.mubr.bf16.mxu0 0
    %436 = vmatmul.mubr.bf16.gmra.mrb[0].mxu0 %v284
    %v437 = vpop.f32.mrb[0].mxu0
    %v438 = vadd.f32 %v328, %v437
    %v439 = vpop.f32.mrb[0].mxu0
    %v440 = vpop.f32.mrb[0].mxu0
    %v441 = vadd.f32 %v333, %v440
    %v442 = vpop.f32.mrb[0].mxu0
    %443 = vmatprep.mubr.bf16.mxu0 0
    %444 = vmatmul.mubr.bf16.gmra.mrb[0].mxu0 %v285
    %v445 = vpop.f32.mrb[0].mxu0
    %v446 = vadd.f32 %v338, %v445
    %v447 = vpop.f32.mrb[0].mxu0
    %v448 = vpop.f32.mrb[0].mxu0
    %v449 = vadd.f32 %v343, %v448
    %v450 = vpop.f32.mrb[0].mxu0
    %451 = vmatprep.mubr.bf16.mxu0 0
    %452 = vmatmul.mubr.bf16.gmra.mrb[0].mxu0 %v286
    %v453 = vpop.f32.mrb[0].mxu0
    %v454 = vadd.f32 %v348, %v453
    %v455 = vpop.f32.mrb[0].mxu0
    %v456 = vpop.f32.mrb[0].mxu0
    %v457 = vadd.f32 %v353, %v456
    %v458 = vpop.f32.mrb[0].mxu0
    %459 = vmatprep.mubr.bf16.mxu0 0
    %460 = vmatmul.mubr.bf16.gmra.mrb[0].mxu0 %v287
    %v461 = vpop.f32.mrb[0].mxu0
    %v462 = vadd.f32 %v358, %v461
    %v463 = vpop.f32.mrb[0].mxu0
    %v464 = vpop.f32.mrb[0].mxu0
    %v465 = vadd.f32 %v363, %v464
    %v466 = vpop.f32.mrb[0].mxu0
    %467 = vmatprep.mubr.bf16.mxu0 0
    %468 = vmatmul.mubr.bf16.gmra.mrb[0].mxu0 %v288
    %v469 = vpop.f32.mrb[0].mxu0
    %v470 = vadd.f32 %v368, %v469
    %v471 = vpop.f32.mrb[0].mxu0
    %v472 = vpop.f32.mrb[0].mxu0
    %v473 = vadd.f32 %v373, %v472
    %v474 = vpop.f32.mrb[0].mxu0
    %475 = vmatprep.mubr.bf16.mxu0 0
    %476 = vmatmul.mubr.bf16.gmra.mrb[0].mxu0 %v289
    %v477 = vpop.f32.mrb[0].mxu0
    %v478 = vadd.f32 %v378, %v477
    %v479 = vpop.f32.mrb[0].mxu0
    %v480 = vpop.f32.mrb[0].mxu0
    %v481 = vadd.f32 %v383, %v480
    %v482 = vpop.f32.mrb[0].mxu0
    %483 = vmatprep.mubr.bf16.mxu0 0
    %484 = vmatmul.mubr.bf16.gmra.mrb[0].mxu0 %v290
    %v485 = vpop.f32.mrb[0].mxu0
    %v486 = vadd.f32 %v388, %v485
    %v487 = vpop.f32.mrb[0].mxu0
    %v488 = vpop.f32.mrb[0].mxu0
    %v489 = vadd.f32 %v393, %v488
    %v490 = vpop.f32.mrb[0].mxu0
    %491 = vdwg.mxu0
    %v492 = vmax.f32 %v430, 0.0
    %v493 = vmax.f32 %v433, 0.0
    %v494 = vmax.f32 %v438, 0.0
    %v495 = vmax.f32 %v441, 0.0
    %v496 = vmax.f32 %v446, 0.0
    %v497 = vmax.f32 %v449, 0.0
    %v498 = vmax.f32 %v454, 0.0
    %v499 = vmax.f32 %v457, 0.0
    %v500 = vmax.f32 %v462, 0.0
    %v501 = vmax.f32 %v465, 0.0
    %v502 = vmax.f32 %v470, 0.0
    %v503 = vmax.f32 %v473, 0.0
    %v504 = vmax.f32 %v478, 0.0
    %v505 = vmax.f32 %v481, 0.0
    %v506 = vmax.f32 %v486, 0.0
    %v507 = vmax.f32 %v489, 0.0
    %v508 = vld [vmem:[%s3] sm:$0xff]
    %v509 = vpack.c.bf16 %v508, %v508
    %v510 = vld [vmem:[%s3 + $0x8] sm:$0xff]
    %v511 = vpack.c.bf16 %v493, %v492
    %v512 = vpack.c.bf16 %v495, %v494
    %v513 = vpack.c.bf16 %v497, %v496
    %v514 = vpack.c.bf16 %v499, %v498
    %v515 = vpack.c.bf16 %v501, %v500
    %v516 = vpack.c.bf16 %v503, %v502
    %v517 = vpack.c.bf16 %v505, %v504
    %v518 = vpack.c.bf16 %v507, %v506
    %520 = vset.pattern.permute.xlu0 0
    %521 = vperm.xlu0 %520, %v510
    %v522 = vpop.permute.xlu0 %521
    %524 = vmatprep.subr.bf16.mxu0 0
    %525 = vmatpush1.bf16.msra.mxu0 %v511
    %526 = vmatprep.subr.bf16.mxu0 0
    %527 = vmatpush1.bf16.msra.mxu0 %v512
    %528 = vmatprep.subr.bf16.mxu0 0
    %529 = vmatpush1.bf16.msra.mxu0 %v513
    %530 = vmatprep.subr.bf16.mxu0 0
    %531 = vmatpush1.bf16.msra.mxu0 %v514
    %532 = vmatprep.subr.bf16.mxu0 0
    %533 = vmatpush1.bf16.msra.mxu0 %v515
    %534 = vmatprep.subr.bf16.mxu0 0
    %535 = vmatpush1.bf16.msra.mxu0 %v516
    %536 = vmatprep.subr.bf16.mxu0 0
    %537 = vmatpush1.bf16.msra.mxu0 %v517
    %538 = vmatprep.subr.bf16.mxu0 0
    %539 = vmatpush1.bf16.msra.mxu0 %v518
    %540 = vmatprep.subr.bf16.mxu0 0
    %541 = vmatpush1.bf16.msra.mxu0 0
    %542 = vmatprep.subr.bf16.mxu0 0
    %543 = vmatpush1.bf16.msra.mxu0 0
    %544 = vmatprep.subr.bf16.mxu0 0
    %545 = vmatpush1.bf16.msra.mxu0 0
    %546 = vmatprep.subr.bf16.mxu0 0
    %547 = vmatpush1.bf16.msra.mxu0 0
    %548 = vmatprep.subr.bf16.mxu0 0
    %549 = vmatpush1.bf16.msra.mxu0 0
    %550 = vmatprep.subr.bf16.mxu0 0
    %551 = vmatpush1.bf16.msra.mxu0 0
    %552 = vmatprep.subr.bf16.mxu0 0
    %553 = vmatpush1.bf16.msra.mxu0 0
    %554 = vmatprep.subr.bf16.mxu0 0
    %555 = vmatpush1.bf16.msra.mxu0 0
    %556 = vmatprep.mubr.bf16.mxu0 0
    %557 = vmatmul.mubr.bf16.gmra.mrb[0].mxu0 %v509
    %v558 = vpop.f32.mrb[0].mxu0
    %v559 = vadd.f32 %v522, %v558
    %v560 = vpop.f32.mrb[0].mxu0
    %v561 = vpop.f32.mrb[0].mxu0
    %v562 = vpop.f32.mrb[0].mxu0
    %563 = vdwg.mxu0
    %vm564 = vcmask 64512
    %565 = vst.msk [vmem:[#allocation2] sm:$0xff] %vm564, %v559
    // Predicated region
    $region18: #{tpu_custom_call.1} parent=1 // pred_check
      _
    $region19: #{tpu_custom_call.1} parent=1 // pred_check_branch
      %567 = sbr.rel (0) target = $region21
    $region20: #{tpu_custom_call.1} parent=1 // pred_region
      %s569 = ssub.s32 128, 128
      %570 = vsyncadd [#allocation3], %s569
      %s572 = sshll.u32 [#allocation2], 4
      %s573 = int_to_ptr.vmem [resolvable:$true] %s572
      %575 = dma.vmem_to_hbm [thread:$0]  %s573, 128, %s4, [#allocation3]
    $region21: #{tpu_custom_call.1} parent=1 // pred_fallthru
      _
    // Predicated region
    $region22: #{tpu_custom_call.1} parent=1 // pred_check
      _
    $region23: #{tpu_custom_call.1} parent=1 // pred_check_branch
      %577 = sbr.rel (0) target = $region25
    $region24: #{tpu_custom_call.1} parent=1 // pred_region
      %578 = dma.done [#allocation3], 128
    $region25: #{tpu_custom_call.1} parent=1 // pred_fallthru
      _
    %579 = vsyncpa [#allocation3], 1

</llo_original>
